<compile_context>
chip_gen: v5e
topology: v5e:2x2
jax: 0.10.0
libtpu: 0.0.40
codegen_flags: <defaults>
</compile_context>

<pallas_src>
import math

import jax
import jax.numpy as jnp
from jax import lax
from jax.experimental import pallas as pl
from jax.experimental.pallas import tpu as pltpu

ALPHA = 0.2  # LeakyReLU negative slope (constructor arg `alpha`)


def _pick_tile(n, cap=256):
    """Tile size for a node axis: a 128-multiple dividing n, else the whole
    axis (a block equal to the full dim is always layout-legal)."""
    if n % 128 == 0:
        t = min(cap, n)
        while t > 128 and n % t != 0:
            t -= 128
        return t
    return n


def _src_proj_kernel(hs_ref, wt_ref, b_ref, asf_ref, c_ref, whp_ref, esrc_ref):
    """Project src nodes once; emit the src half of the attention logits.

    hs_ref   : (tk, F_in)     bf16  src node features
    wt_ref   : (F_in, F_pad)  bf16  W^T zero-padded to 128 lanes
    b_ref    : (1, F_pad)     f32   W bias zero-padded
    asf_ref  : (1, F_in)      bf16  folded vector W^T @ a_src
    c_ref    : (1, 1)         f32   SMEM scalar: b_W.a_src + b_W.a_dst + b_a
    whp_ref  : (tk, F_pad)    bf16  out: Wh_src, lane-dense padded
    esrc_ref : (1, tk)        f32   out: per-src logit contribution (+ consts)
    """
    wh = jnp.dot(hs_ref[...], wt_ref[...], preferred_element_type=jnp.float32)
    whp_ref[...] = (wh + b_ref[...]).astype(whp_ref.dtype)
    # Thin F_in-contraction against the folded `a_src` vector: no dst
    # projection, no second pass over Wh_src.
    esrc = lax.dot_general(asf_ref[...], hs_ref[...],
                           (((1,), (1,)), ((), ())),
                           preferred_element_type=jnp.float32)
    esrc_ref[...] = esrc + c_ref[0, 0]


def _attn_kernel(hd_ref, adf_ref, esrc_ref, whp_ref, out_ref,
                 edst_sc, m_sc, l_sc, acc_sc):
    """Flash-style online-softmax attention + aggregation over src tiles.

    hd_ref   : (td, F_in)    bf16  dst node features
    adf_ref  : (F_in, 1)     bf16  folded vector W^T @ a_dst
    esrc_ref : (1, tk)       f32   e_src row tile
    whp_ref  : (tk, F_pad)   bf16  Wh_src tile (lane-dense padded)
    out_ref  : (td, F_pad)   f32   h_prime (padded; sliced outside)
    """
    j = pl.program_id(1)

    @pl.when(j == 0)
    def _():
        # e_dst_i = h_dst_i . (W^T a_dst): thin matvec, once per dst tile.
        edst_sc[...] = jnp.dot(hd_ref[...], adf_ref[...],
                               preferred_element_type=jnp.float32)
        m_sc[...] = jnp.full_like(m_sc, -jnp.inf)
        l_sc[...] = jnp.zeros_like(l_sc)
        acc_sc[...] = jnp.zeros_like(acc_sc)

    # Rank-2 score structure: e[i,j] = e_dst[i] + e_src[j] + const.
    # Pure VPU broadcast add in f32 -- only one (td, tk) tile ever lives in VMEM.
    s = edst_sc[...] + esrc_ref[...]
    s = jnp.where(s >= 0, s, ALPHA * s)               # LeakyReLU

    m_new = jnp.maximum(m_sc[...], jnp.max(s, axis=-1, keepdims=True))
    alpha = jnp.exp(m_sc[...] - m_new)
    p = jnp.exp(s - m_new)                            # f32 (v5e-safe softmax)
    l_sc[...] = alpha * l_sc[...] + jnp.sum(p, axis=-1, keepdims=True)
    acc_sc[...] = alpha * acc_sc[...] + jnp.dot(
        p.astype(whp_ref.dtype), whp_ref[...], preferred_element_type=jnp.float32)
    m_sc[...] = m_new

    @pl.when(j == pl.num_programs(1) - 1)
    def _():
        out_ref[...] = (acc_sc[...] *
                        pl.reciprocal(l_sc[...], approx=True)).astype(out_ref.dtype)


def directed_gat_forward(h_src, h_dst, W, b_W, a_w, a_b):
    """Wrapper: fold `a` into W (glue), then two pallas_calls."""
    n_src, f_in = h_src.shape
    n_dst, _ = h_dst.shape
    f_out = W.shape[0]
    f_pad = ((f_out + 127) // 128) * 128              # lane-dense output width

    # ---- parameter folding (glue; amortized across calls in practice) ----
    wt = W.T.astype(jnp.float32)                                    # (F_in, F_out)
    wt_pad = jnp.pad(wt, ((0, 0), (0, f_pad - f_out))).astype(jnp.bfloat16)
    b_pad = jnp.pad(b_W.reshape(1, f_out), ((0, 0), (0, f_pad - f_out)))
    a_src = a_w[0, :f_out]
    a_dst = a_w[0, f_out:]
    a_src_folded = (wt @ a_src).reshape(1, f_in).astype(jnp.bfloat16)
    a_dst_folded = (wt @ a_dst).reshape(f_in, 1).astype(jnp.bfloat16)
    const = (jnp.dot(b_W, a_src) + jnp.dot(b_W, a_dst) + a_b[0]) \
        .reshape(1, 1).astype(jnp.float32)

    hs = h_src.astype(jnp.bfloat16)
    hd = h_dst.astype(jnp.bfloat16)

    # ---- stage 1: project src nodes ONCE (shared by every dst tile) ----
    ts = _pick_tile(n_src)
    wh_pad, e_src = pl.pallas_call(
        _src_proj_kernel,
        out_shape=(jax.ShapeDtypeStruct((n_src, f_pad), jnp.bfloat16),
                   jax.ShapeDtypeStruct((1, n_src), jnp.float32)),
        grid=(n_src // ts,),
        in_specs=[pl.BlockSpec((ts, f_in), lambda i: (i, 0)),
                  pl.BlockSpec((f_in, f_pad), lambda i: (0, 0)),
                  pl.BlockSpec((1, f_pad), lambda i: (0, 0)),
                  pl.BlockSpec((1, f_in), lambda i: (0, 0)),
                  pl.BlockSpec(memory_space=pltpu.MemorySpace.SMEM)],
        out_specs=(pl.BlockSpec((ts, f_pad), lambda i: (i, 0)),
                   pl.BlockSpec((1, ts), lambda i: (0, i))),
        compiler_params=pltpu.CompilerParams(dimension_semantics=("parallel",)),
    )(hs, wt_pad, b_pad, a_src_folded, const)

    # ---- stage 2: tiled flash-style attention over (dst_tiles, src_tiles) ----
    td = _pick_tile(n_dst)
    tk = _pick_tile(n_src)
    out_pad = pl.pallas_call(
        _attn_kernel,
        out_shape=jax.ShapeDtypeStruct((n_dst, f_pad), jnp.float32),
        grid=(n_dst // td, n_src // tk),
        in_specs=[pl.BlockSpec((td, f_in), lambda i, j: (i, 0)),
                  pl.BlockSpec((f_in, 1), lambda i, j: (0, 0)),
                  pl.BlockSpec((1, tk), lambda i, j: (0, j)),
                  pl.BlockSpec((tk, f_pad), lambda i, j: (j, 0))],
        out_specs=pl.BlockSpec((td, f_pad), lambda i, j: (i, 0)),
        scratch_shapes=[pltpu.VMEM((td, 1), jnp.float32),   # e_dst
                        pltpu.VMEM((td, 1), jnp.float32),   # running max m
                        pltpu.VMEM((td, 1), jnp.float32),   # running sum l
                        pltpu.VMEM((td, f_pad), jnp.float32)],  # acc
        compiler_params=pltpu.CompilerParams(
            dimension_semantics=("parallel", "arbitrary")),
    )(hd, a_dst_folded, e_src, wh_pad)

    return out_pad[:, :f_out]


def _xavier_uniform(key, shape, gain):
    fan_out, fan_in = shape
    limit = gain * math.sqrt(6.0 / (fan_in + fan_out))
    return jax.random.uniform(key, shape, jnp.float32, -limit, limit)


if __name__ == "__main__":
    key = jax.random.PRNGKey(0)
    n_src, n_dst = 8, 8
    in_features = out_features = 32

    k1, k2, k3, k4, k5, k6 = jax.random.split(key, 6)

    # self.W = nn.Linear(in, out); xavier_uniform_(gain=1.414); default bias init
    W = _xavier_uniform(k1, (out_features, in_features), 1.414)
    b_W = jax.random.uniform(k2, (out_features,), jnp.float32,
                             -1.0 / math.sqrt(in_features),
                             1.0 / math.sqrt(in_features))
    # self.a = nn.Linear(2*out, 1); xavier_uniform_(gain=1.414)
    a_w = _xavier_uniform(k3, (1, 2 * out_features), 1.414)
    a_b = jax.random.uniform(k4, (1,), jnp.float32,
                             -1.0 / math.sqrt(2 * out_features),
                             1.0 / math.sqrt(2 * out_features))

    # Node features `hp` for src (turn t-1) and dst (turn t) nodes.
    h_src = jax.random.normal(k5, (n_src, in_features), jnp.float32)
    h_dst = jax.random.normal(k6, (n_dst, in_features), jnp.float32)

    out = directed_gat_forward(h_src, h_dst, W, b_W, a_w, a_b)
    out = jax.block_until_ready(out)

    # Pure-JAX f32 reference (original unfused formula, dense bipartite edges).
    wh_s = h_src @ W.T + b_W
    wh_d = h_dst @ W.T + b_W
    e = (wh_d @ a_w[0, out_features:]).reshape(-1, 1) \
        + (wh_s @ a_w[0, :out_features]).reshape(1, -1) + a_b[0]
    e = jnp.where(e >= 0, e, ALPHA * e)
    att = jax.nn.softmax(e, axis=-1)
    ref = att @ wh_s

    assert out.shape == (n_dst, out_features)
    # bf16 MXU operands + approx reciprocal => loose tolerance vs f32 reference.
    max_err = float(jnp.max(jnp.abs(out - ref)))
    assert jnp.allclose(out, ref, atol=5e-2, rtol=5e-2), \
        f"mismatch vs reference (max abs err {max_err:.4g})"
    print("KERNEL_OK")
</pallas_src>

<mosaic_0001>
module attributes {stable_mosaic.version = 11 : i64} {
  func.func @_src_proj_kernel(%arg0: i32, %arg1: memref<8x32xbf16, #tpu.memory_space<vmem>>, %arg2: memref<32x128xbf16, #tpu.memory_space<vmem>>, %arg3: memref<1x128xf32, #tpu.memory_space<vmem>>, %arg4: memref<1x32xbf16, #tpu.memory_space<vmem>>, %arg5: memref<1x1xf32, #tpu.memory_space<smem>>, %arg6: memref<8x128xbf16, #tpu.memory_space<vmem>>, %arg7: memref<1x8xf32, #tpu.memory_space<vmem>>) attributes {dimension_semantics = [#tpu.dimension_semantics<parallel>], iteration_bounds = array<i64: 1>, scalar_prefetch = 0 : i64, scratch_operands = 0 : i64, tpu.core_type = #tpu.core_type<tc>, window_params = [{transform_indices = @transform_0, window_bounds = array<i64: 8, 32>}, {pipeline_mode = #tpu.pipeline_mode<synchronous>, transform_indices = @transform_1, window_bounds = array<i64: 32, 128>}, {pipeline_mode = #tpu.pipeline_mode<synchronous>, transform_indices = @transform_2, window_bounds = array<i64: 1, 128>}, {pipeline_mode = #tpu.pipeline_mode<synchronous>, transform_indices = @transform_3, window_bounds = array<i64: 1, 32>}, {transform_indices = @transform_4, window_bounds = array<i64: 1, 1>}, {transform_indices = @transform_5, window_bounds = array<i64: 8, 128>}, {transform_indices = @transform_6, window_bounds = array<i64: 1, 8>}]} {
    %c0 = arith.constant 0 : index
    %c0_0 = arith.constant 0 : index
    %0 = vector.load %arg1[%c0, %c0_0] : memref<8x32xbf16, #tpu.memory_space<vmem>>, vector<8x32xbf16>
    %c0_1 = arith.constant 0 : index
    %c0_2 = arith.constant 0 : index
    %1 = vector.load %arg2[%c0_1, %c0_2] : memref<32x128xbf16, #tpu.memory_space<vmem>>, vector<32x128xbf16>
    %cst = arith.constant dense<0.000000e+00> : vector<8x128xf32>
    %2 = tpu.matmul %0, %1, %cst {dimension_numbers = #tpu.dot_dimension_numbers<[1], [0], [0], [1], [0, 0, 1, 1], [], []>} : vector<8x32xbf16>, vector<32x128xbf16>, vector<8x128xf32> -> vector<8x128xf32>
    %c0_3 = arith.constant 0 : index
    %c0_4 = arith.constant 0 : index
    %3 = vector.load %arg3[%c0_3, %c0_4] : memref<1x128xf32, #tpu.memory_space<vmem>>, vector<1x128xf32>
    %4 = vector.broadcast %3 : vector<1x128xf32> to vector<8x128xf32>
    %5 = arith.addf %2, %4 : vector<8x128xf32>
    %6 = arith.truncf %5 : vector<8x128xf32> to vector<8x128xbf16>
    %c0_5 = arith.constant 0 : index
    %c0_6 = arith.constant 0 : index
    %7 = vector.load %arg6[%c0_5, %c0_6] : memref<8x128xbf16, #tpu.memory_space<vmem>>, vector<8x128xbf16>
    tpu.vector_store %arg6[%c0_5, %c0_6], %6 {strides = array<i32>} : memref<8x128xbf16, #tpu.memory_space<vmem>>, vector<8x128xbf16>,
    %c0_7 = arith.constant 0 : index
    %c0_8 = arith.constant 0 : index
    %8 = vector.load %arg4[%c0_7, %c0_8] : memref<1x32xbf16, #tpu.memory_space<vmem>>, vector<1x32xbf16>
    %c0_9 = arith.constant 0 : index
    %c0_10 = arith.constant 0 : index
    %9 = vector.load %arg1[%c0_9, %c0_10] : memref<8x32xbf16, #tpu.memory_space<vmem>>, vector<8x32xbf16>
    %cst_11 = arith.constant dense<0.000000e+00> : vector<1x8xf32>
    %10 = tpu.matmul %8, %9, %cst_11 {dimension_numbers = #tpu.dot_dimension_numbers<[1], [1], [0], [0], [0, 0, 1, 0], [], []>} : vector<1x32xbf16>, vector<8x32xbf16>, vector<1x8xf32> -> vector<1x8xf32>
    %c0_12 = arith.constant 0 : index
    %c0_13 = arith.constant 0 : index
    %11 = memref.load %arg5[%c0_12, %c0_13] : memref<1x1xf32, #tpu.memory_space<smem>>
    %12 = vector.broadcast %11 : f32 to vector<1x8xf32>
    %13 = arith.addf %10, %12 : vector<1x8xf32>
    %c0_14 = arith.constant 0 : index
    %c0_15 = arith.constant 0 : index
    %14 = vector.load %arg7[%c0_14, %c0_15] : memref<1x8xf32, #tpu.memory_space<vmem>>, vector<1x8xf32>
    tpu.vector_store %arg7[%c0_14, %c0_15], %13 {strides = array<i32>} : memref<1x8xf32, #tpu.memory_space<vmem>>, vector<1x8xf32>,
    return
  }
  func.func @transform_0(%arg0: i32) -> (i32, i32) {
    %c0_i32 = arith.constant 0 : i32
    %c0_i32_0 = arith.constant 0 : i32
    return %arg0, %c0_i32 : i32, i32
  }
  func.func @transform_1(%arg0: i32) -> (i32, i32) {
    %c0_i32 = arith.constant 0 : i32
    %c0_i32_0 = arith.constant 0 : i32
    %c0_i32_1 = arith.constant 0 : i32
    return %c0_i32, %c0_i32_0 : i32, i32
  }
  func.func @transform_2(%arg0: i32) -> (i32, i32) {
    %c0_i32 = arith.constant 0 : i32
    %c0_i32_0 = arith.constant 0 : i32
    %c0_i32_1 = arith.constant 0 : i32
    return %c0_i32, %c0_i32_0 : i32, i32
  }
  func.func @transform_3(%arg0: i32) -> (i32, i32) {
    %c0_i32 = arith.constant 0 : i32
    %c0_i32_0 = arith.constant 0 : i32
    %c0_i32_1 = arith.constant 0 : i32
    return %c0_i32, %c0_i32_0 : i32, i32
  }
  func.func @transform_4(%arg0: i32) -> (i32, i32) {
    %c0_i32 = arith.constant 0 : i32
    %c0_i32_0 = arith.constant 0 : i32
    %c0_i32_1 = arith.constant 0 : i32
    return %c0_i32, %c0_i32_0 : i32, i32
  }
  func.func @transform_5(%arg0: i32) -> (i32, i32) {
    %c0_i32 = arith.constant 0 : i32
    %c0_i32_0 = arith.constant 0 : i32
    return %arg0, %c0_i32 : i32, i32
  }
  func.func @transform_6(%arg0: i32) -> (i32, i32) {
    %c0_i32 = arith.constant 0 : i32
    %c0_i32_0 = arith.constant 0 : i32
    return %c0_i32, %arg0 : i32, i32
  }
}

</mosaic_0001>

<llo_original>
// kernel: tpu_custom_call.1
$region0: #{tpu_custom_call.1}
  #allocation0 [shape = 'u32[]', space=smem, size = 0x4, offset = 0x4, fixed_abs, tag = 'smem constant byte address 0x4 - core index']
  #allocation1 [shape = 'u32[72,128]{1,0:T(1,128)}', space=vmem, size = 0x9000, scoped, tag = 'internal scratch']
  #allocation2 [shape = 'f32[1,1]{1,0:T(1,128)S(6)}', space=smem, size = 0x200, scoped, tag = 'scoped memory for tpu_custom_call.1']
  %s0 = inlined_call_operand.hbm [shape: bf16[8,32], index: 0, kind: input, shape index: {}]
  %s1 = inlined_call_operand.hbm [shape: bf16[32,128], index: 1, kind: input, shape index: {}]
  %s2 = inlined_call_operand.vmem [shape: f32[1,128], index: 2, kind: input, shape index: {}]
  %s3 = inlined_call_operand.vmem [shape: bf16[1,32], index: 3, kind: input, shape index: {}]
  %s4 = inlined_call_operand.<no memory space> [shape: f32[1,1], index: 4, kind: input, shape index: {}]
  %s5 = inlined_call_operand.hbm [shape: bf16[8,128], index: 5, kind: output, shape index: {0}]
  %s6 = inlined_call_operand.hbm [shape: f32[1,8], index: 6, kind: output, shape index: {1}]
  %7 = xla_tuple %s5, %s6
  %s8 = sld [smem:[#allocation0]]
  $region46: #{tpu_custom_call.1} parent=0
    _
  %s10 = ssub.s32 1, %s8
  %s11 = scalar_select 0, %s10, %s8
  %12 = sst [smem:[#allocation2]] %s4
  $region1: #{tpu_custom_call.1} parent=0
    #allocation3 [shape = 'u8[2048]{0}', space=vmem, size = 0x800, scoped, tag = 'input window, operand 0, single buffered']
    #allocation4 [shape = 's32[1]{0}', space=sflag, size = 0x4, scoped, tag = 'scoped memory for tpu_custom_call.1']
    #allocation5 [shape = 's32[1]{0}', space=sflag, size = 0x4, scoped, tag = 'scoped memory for tpu_custom_call.1']
    #allocation6 [shape = 'u8[8192]{0}', space=vmem, size = 0x2000, scoped, tag = 'input window, operand 1, single buffered']
    #allocation7 [shape = 's32[1]{0}', space=sflag, size = 0x4, scoped, tag = 'scoped memory for tpu_custom_call.1']
    #allocation8 [shape = 'u8[2048]{0}', space=vmem, size = 0x800, scoped, tag = 'output window, operand 0, single buffered']
    #allocation9 [shape = 'u8[512]{0}', space=vmem, size = 0x400, scoped, tag = 'output window, operand 1, single buffered']
    #allocation10 [shape = 's32[1]{0}', space=sflag, size = 0x4, scoped, tag = 'scoped memory for tpu_custom_call.1']
    %13 = vsyncpa [#allocation4], 0
    %14 = vsyncpa [#allocation7], 0
    %15 = vsyncpa [#allocation5], 0
    %16 = vsyncpa [#allocation10], 0
    // Predicated region
    $region2: #{tpu_custom_call.1} parent=1 // pred_check
      _
    $region3: #{tpu_custom_call.1} parent=1 // pred_check_branch
      %18 = sbr.rel (0) target = $region5
    $region4: #{tpu_custom_call.1} parent=1 // pred_region
      %20 = vsyncadd [#allocation4], 0
      %s22 = sshll.u32 %s0, 4
      %s23 = int_to_ptr.hbm [resolvable:$true] %s22
      %s24 = sshll.u32 [#allocation3], 4
      %s25 = int_to_ptr.vmem [resolvable:$true] %s24
      %27 = dma.hbm_to_vmem [thread:$0]  %s23, 64, %s25, [#allocation4]
    $region5: #{tpu_custom_call.1} parent=1 // pred_fallthru
      _
    // Predicated region
    $region6: #{tpu_custom_call.1} parent=1 // pred_check
      _
    $region7: #{tpu_custom_call.1} parent=1 // pred_check_branch
      %29 = sbr.rel (0) target = $region9
    $region8: #{tpu_custom_call.1} parent=1 // pred_region
      %31 = vsyncadd [#allocation7], 0
      %s32 = sshll.u32 %s1, 4
      %s33 = int_to_ptr.hbm [resolvable:$true] %s32
      %s34 = sshll.u32 [#allocation6], 4
      %s35 = int_to_ptr.vmem [resolvable:$true] %s34
      %40 = dma.hbm_to_vmem [thread:$0]  %s33, 256, %s35, [#allocation7], 64, 64, 4
    $region9: #{tpu_custom_call.1} parent=1 // pred_fallthru
      _
    // Predicated region
    $region10: #{tpu_custom_call.1} parent=1 // pred_check
      _
    $region11: #{tpu_custom_call.1} parent=1 // pred_check_branch
      %42 = sbr.rel (0) target = $region13
    $region12: #{tpu_custom_call.1} parent=1 // pred_region
      _
    $region13: #{tpu_custom_call.1} parent=1 // pred_fallthru
      _
    // Predicated region
    $region14: #{tpu_custom_call.1} parent=1 // pred_check
      _
    $region15: #{tpu_custom_call.1} parent=1 // pred_check_branch
      %44 = sbr.rel (0) target = $region17
    $region16: #{tpu_custom_call.1} parent=1 // pred_region
      _
    $region17: #{tpu_custom_call.1} parent=1 // pred_fallthru
      _
    // Predicated region
    $region18: #{tpu_custom_call.1} parent=1 // pred_check
      _
    $region19: #{tpu_custom_call.1} parent=1 // pred_check_branch
      %46 = sbr.rel (0) target = $region21
    $region20: #{tpu_custom_call.1} parent=1 // pred_region
      _
    $region21: #{tpu_custom_call.1} parent=1 // pred_fallthru
      _
    // Predicated region
    $region22: #{tpu_custom_call.1} parent=1 // pred_check
      _
    $region23: #{tpu_custom_call.1} parent=1 // pred_check_branch
      %48 = sbr.rel (0) target = $region25
    $region24: #{tpu_custom_call.1} parent=1 // pred_region
      %50 = dma.done [#allocation4], 64
    $region25: #{tpu_custom_call.1} parent=1 // pred_fallthru
      _
    // Predicated region
    $region26: #{tpu_custom_call.1} parent=1 // pred_check
      _
    $region27: #{tpu_custom_call.1} parent=1 // pred_check_branch
      %52 = sbr.rel (0) target = $region29
    $region28: #{tpu_custom_call.1} parent=1 // pred_region
      %54 = dma.done [#allocation7], 256
    $region29: #{tpu_custom_call.1} parent=1 // pred_fallthru
      _
    %v56 = vld [vmem:[#allocation3] sm:$0xf]
    %v57 = vld [vmem:[#allocation6] sm:$0xf]
    %v58 = vld [vmem:[#allocation6 + $0x4] sm:$0xf]
    %v59 = vld [vmem:[#allocation6 + $0x8] sm:$0xf]
    %v60 = vld [vmem:[#allocation6 + $0xc] sm:$0xf]
    %v61 = vld [vmem:[%s2] sm:$0x1]
    %v63 = vperm.slane %v61, 0
    %v69 = vunpack.c.l.b16 %v57
    %v70 = vunpack.c.l.b16 %v58
    %v71 = vunpack.c.l.b16 %v59
    %v72 = vunpack.c.l.b16 %v60
    %v73 = vpack.c.b16 %v70, %v69
    %v74 = vpack.c.b16 %v72, %v71
    %vm77 = vcmask 261120
    %v79 = vsel %vm77, %v56, 0
    %81 = vmatpush.bf16.msra.mxu0 0
    %82 = vmatpush.bf16.msra.mxu0 0
    %83 = vmatpush.bf16.msra.mxu0 0
    %84 = vmatpush.bf16.msra.mxu0 0
    %85 = vmatpush.bf16.msra.mxu0 0
    %86 = vmatpush.bf16.msra.mxu0 0
    %87 = vmatpush.bf16.msra.mxu0 %v74
    %88 = vmatpush.bf16.msra.mxu0 %v73
    %89 = vmatmul.bf16.gmra.mxu0 %v79
    %v90 = vpop.f32.mrf.mxu0
    %v91 = vadd.f32 %v63, %v90
    %v92 = vpop.f32.mrf.mxu0
    %93 = vdwg.mxu0
    %v94 = vpack.c.bf16 %v91, %v91
    %95 = vst [vmem:[#allocation8] sm:$0xf] %v94
    %v96 = vld [vmem:[%s3] sm:$0x1]
    %v97 = vld [vmem:[#allocation3] sm:$0xf]
    %s98 = sld [smem:[#allocation2]]
    %v99 = vstv %s98
    %v101 = vsel %vm77, %v96, 0
    %v104 = vsel %vm77, %v97, 0
    %106 = vmatpush.bf16.xpose.msra.mxu0 0
    %107 = vmatpush.bf16.xpose.msra.mxu0 0
    %108 = vmatpush.bf16.xpose.msra.mxu0 0
    %109 = vmatpush.bf16.xpose.msra.mxu0 0
    %110 = vmatpush.bf16.xpose.msra.mxu0 0
    %111 = vmatpush.bf16.xpose.msra.mxu0 0
    %112 = vmatpush.bf16.xpose.msra.mxu0 0
    %113 = vmatpush.bf16.xpose.msra.mxu0 %v104
    %114 = vmatmul.bf16.gmra.mxu0 %v101
    %v115 = vpop.f32.mrf.mxu0
    %v116 = vadd.f32 %v99, %v115
    %v117 = vpop.f32.mrf.mxu0
    %118 = vdwg.mxu0
    %vm119 = vcmask 57344
    %120 = vst.msk [vmem:[#allocation9] sm:$0x1] %vm119, %v116
    // Predicated region
    $region30: #{tpu_custom_call.1} parent=1 // pred_check
      _
    $region31: #{tpu_custom_call.1} parent=1 // pred_check_branch
      %122 = sbr.rel (0) target = $region33
    $region32: #{tpu_custom_call.1} parent=1 // pred_region
      %124 = vsyncadd [#allocation5], 0
      %s126 = sshll.u32 [#allocation8], 4
      %s127 = int_to_ptr.vmem [resolvable:$true] %s126
      %s128 = sshll.u32 %s5, 4
      %s129 = int_to_ptr.hbm [resolvable:$true] %s128
      %131 = dma.vmem_to_hbm [thread:$0]  %s127, 64, %s129, [#allocation5]
    $region33: #{tpu_custom_call.1} parent=1 // pred_fallthru
      _
    // Predicated region
    $region34: #{tpu_custom_call.1} parent=1 // pred_check
      _
    $region35: #{tpu_custom_call.1} parent=1 // pred_check_branch
      %133 = sbr.rel (0) target = $region37
    $region36: #{tpu_custom_call.1} parent=1 // pred_region
      %135 = vsyncadd [#allocation10], 0
      %s137 = sshll.u32 [#allocation9], 4
      %s138 = int_to_ptr.vmem [resolvable:$true] %s137
      %s139 = sshll.u32 %s6, 4
      %s140 = int_to_ptr.hbm [resolvable:$true] %s139
      %142 = dma.vmem_to_hbm [thread:$0]  %s138, 16, %s140, [#allocation10]
    $region37: #{tpu_custom_call.1} parent=1 // pred_fallthru
      _
    // Predicated region
    $region38: #{tpu_custom_call.1} parent=1 // pred_check
      _
    $region39: #{tpu_custom_call.1} parent=1 // pred_check_branch
      %144 = sbr.rel (0) target = $region41
    $region40: #{tpu_custom_call.1} parent=1 // pred_region
      %146 = dma.done [#allocation5], 64
    $region41: #{tpu_custom_call.1} parent=1 // pred_fallthru
      _
    // Predicated region
    $region42: #{tpu_custom_call.1} parent=1 // pred_check
      _
    $region43: #{tpu_custom_call.1} parent=1 // pred_check_branch
      %148 = sbr.rel (0) target = $region45
    $region44: #{tpu_custom_call.1} parent=1 // pred_region
      %150 = dma.done [#allocation10], 16
    $region45: #{tpu_custom_call.1} parent=1 // pred_fallthru
      _
    %151 = vsyncpa [#allocation4], 1
    %152 = vsyncpa [#allocation7], 1
    %153 = vsyncpa [#allocation5], 1
    %154 = vsyncpa [#allocation10], 1

</llo_original>
